<compile_context>
chip_gen: v6e
topology: v6e:2x2x1
jax: 0.10.0
libtpu: 0.0.40
codegen_flags: <defaults>
</compile_context>

<pallas_src>
import functools

import jax
import jax.numpy as jnp
from jax.experimental import pallas as pl
from jax.experimental.pallas import tpu as pltpu


def _round_up(x, m):
    return (x + m - 1) // m * m


def hybrid_kernel(ue_ref, ie_ref, ct_ref,
                  cw1_ref, cb1_ref, cw2_ref, cb2_ref,
                  fw1_ref, fb1_ref, fw2_ref, fb2_ref,
                  out_ref):
    # ---- CF branch: elementwise product + sublane reduce -> (1, T)
    cf_pred = jnp.sum(ue_ref[...] * ie_ref[...], axis=0, keepdims=True)

    # ---- Content branch: MXU matmul (H,F)@(F,T) -> ReLU -> VPU/XLU projection
    h = jnp.dot(cw1_ref[...], ct_ref[...],
                preferred_element_type=jnp.float32) + cb1_ref[...]
    h = jnp.maximum(h, 0.0)
    # Linear(H, 1) as multiply + sublane reduce (avoids N=1 MXU matmul).
    content_pred = (jnp.sum(h * cw2_ref[...], axis=0, keepdims=True)
                    + cb2_ref[0])                                    # (1, T)

    # ---- Fusion head: Linear(2, H) expanded as two rank-1 broadcasts.
    h2 = (fw1_ref[:, 0:1] * cf_pred
          + fw1_ref[:, 1:2] * content_pred
          + fb1_ref[...])                                            # (H, T)
    h2 = jnp.maximum(h2, 0.0)
    out = jnp.sum(h2 * fw2_ref[...], axis=0, keepdims=True) + fb2_ref[0]

    out_ref[...] = out                                               # (1, T)


@functools.partial(jax.jit, static_argnames=("tile_b",))
def hybrid_recommender_forward(params, user_idx, item_idx, content_feats,
                               *, tile_b=1024):
    # Glue: embedding gathers (data-dependent indexing) stay in plain JAX,
    # then everything is presented to the kernel in (feature, batch) layout.
    ue = jnp.take(params["user_emb"], user_idx, axis=0).T    # (E, B)
    ie = jnp.take(params["item_emb"], item_idx, axis=0).T    # (E, B)
    ct = content_feats.T.astype(jnp.float32)                 # (F, B)

    B = content_feats.shape[0]
    E = ue.shape[0]
    F = ct.shape[0]
    H = params["cw1"].shape[0]

    # Tile the batch (lane) axis; pad to a multiple of the tile.
    tile_b = min(tile_b, _round_up(B, 128))
    Bp = _round_up(B, tile_b)
    pad = Bp - B
    if pad:
        ue = jnp.pad(ue, ((0, 0), (0, pad)))
        ie = jnp.pad(ie, ((0, 0), (0, pad)))
        ct = jnp.pad(ct, ((0, 0), (0, pad)))

    grid = (Bp // tile_b,)

    batch_spec = lambda rows: pl.BlockSpec((rows, tile_b), lambda i: (0, i))
    resident = lambda shape: pl.BlockSpec(shape, lambda i: (0, 0))
    smem = pl.BlockSpec(memory_space=pltpu.MemorySpace.SMEM)

    out = pl.pallas_call(
        hybrid_kernel,
        out_shape=jax.ShapeDtypeStruct((1, Bp), jnp.float32),
        grid=grid,
        in_specs=[
            batch_spec(E),            # ue   (E, Bp)
            batch_spec(E),            # ie   (E, Bp)
            batch_spec(F),            # ct   (F, Bp)
            resident((H, F)),         # cw1
            resident((H, 1)),         # cb1
            resident((H, 1)),         # cw2
            smem,                     # cb2  (1,)
            resident((H, 2)),         # fw1
            resident((H, 1)),         # fb1
            resident((H, 1)),         # fw2
            smem,                     # fb2  (1,)
        ],
        out_specs=pl.BlockSpec((1, tile_b), lambda i: (0, i)),
        compiler_params=pltpu.CompilerParams(
            dimension_semantics=("parallel",),
            vmem_limit_bytes=32 * 1024 * 1024,
        ),
    )(
        ue, ie, ct,
        params["cw1"], params["cb1"], params["cw2"], params["cb2"],
        params["fw1"], params["fb1"], params["fw2"], params["fb2"],
    )
    return out[0, :B]   # .squeeze(-1)


def init_params(key, num_users, num_items, content_input_dim,
                cf_emb_dim=32, hidden_dim=128):
    """Deterministic synthetic init (PyTorch-style uniform ±1/sqrt(fan_in)).

    Weight layouts chosen for the kernel's (feature, batch) data layout:
      cw1 (H, F)   cb1 (H, 1)   cw2 (H, 1)   cb2 (1,)
      fw1 (H, 2)   fb1 (H, 1)   fw2 (H, 1)   fb2 (1,)
    """
    ks = jax.random.split(key, 12)

    def lin(kw, kb, fan_in, w_shape, b_shape):
        bound = 1.0 / jnp.sqrt(fan_in)
        w = jax.random.uniform(kw, w_shape, jnp.float32, -bound, bound)
        b = jax.random.uniform(kb, b_shape, jnp.float32, -bound, bound)
        return w, b

    cw1, cb1 = lin(ks[2], ks[3], content_input_dim,
                   (hidden_dim, content_input_dim), (hidden_dim, 1))
    cw2, cb2 = lin(ks[4], ks[5], hidden_dim, (hidden_dim, 1), (1,))
    fw1, fb1 = lin(ks[6], ks[7], 2, (hidden_dim, 2), (hidden_dim, 1))
    fw2, fb2 = lin(ks[8], ks[9], hidden_dim, (hidden_dim, 1), (1,))

    return {
        "user_emb": jax.random.normal(ks[0], (num_users, cf_emb_dim), jnp.float32) * 0.1,
        "item_emb": jax.random.normal(ks[1], (num_items, cf_emb_dim), jnp.float32) * 0.1,
        "cw1": cw1, "cb1": cb1, "cw2": cw2, "cb2": cb2,
        "fw1": fw1, "fb1": fb1, "fw2": fw2, "fb2": fb2,
    }


if __name__ == "__main__":
    # Small shapes consistent with the module.
    NUM_USERS, NUM_ITEMS = 10, 20
    CONTENT_DIM, CF_EMB_DIM, HIDDEN_DIM = 16, 32, 128
    B = 8

    root = jax.random.PRNGKey(0)
    k_params, k_u, k_i, k_c = jax.random.split(root, 4)

    params = init_params(k_params, NUM_USERS, NUM_ITEMS, CONTENT_DIM,
                         cf_emb_dim=CF_EMB_DIM, hidden_dim=HIDDEN_DIM)

    user_idx = jax.random.randint(k_u, (B,), 0, NUM_USERS, dtype=jnp.int32)
    item_idx = jax.random.randint(k_i, (B,), 0, NUM_ITEMS, dtype=jnp.int32)
    content_feats = jax.random.normal(k_c, (B, CONTENT_DIM), jnp.float32)

    out = hybrid_recommender_forward(params, user_idx, item_idx, content_feats)
    out = jax.block_until_ready(out)
    assert out.shape == (B,) and out.dtype == jnp.float32

    # Pure-JAX reference check (same math, outside Pallas).
    ue_g = jnp.take(params["user_emb"], user_idx, axis=0)
    ie_g = jnp.take(params["item_emb"], item_idx, axis=0)
    cf_ref = jnp.sum(ue_g * ie_g, axis=-1, keepdims=True)                   # (B,1)
    h_ref = jnp.maximum(content_feats @ params["cw1"].T + params["cb1"][:, 0], 0.0)
    cp_ref = h_ref @ params["cw2"] + params["cb2"][0]                       # (B,1)
    x_ref = jnp.concatenate([cf_ref, cp_ref], axis=-1)                      # (B,2)
    h2_ref = jnp.maximum(x_ref @ params["fw1"].T + params["fb1"][:, 0], 0.0)
    ref = (h2_ref @ params["fw2"])[:, 0] + params["fb2"][0]                 # (B,)

    assert jnp.allclose(out, ref, atol=1e-4, rtol=1e-4), (out, ref)

    print("KERNEL_OK")
</pallas_src>

<mosaic_0001>
module attributes {stable_mosaic.version = 11 : i64} {
  func.func @hybrid_kernel(%arg0: i32, %arg1: memref<32x128xf32, #tpu.memory_space<vmem>>, %arg2: memref<32x128xf32, #tpu.memory_space<vmem>>, %arg3: memref<16x128xf32, #tpu.memory_space<vmem>>, %arg4: memref<128x16xf32, #tpu.memory_space<vmem>>, %arg5: memref<128x1xf32, #tpu.memory_space<vmem>>, %arg6: memref<128x1xf32, #tpu.memory_space<vmem>>, %arg7: memref<1xf32, #tpu.memory_space<smem>>, %arg8: memref<128x2xf32, #tpu.memory_space<vmem>>, %arg9: memref<128x1xf32, #tpu.memory_space<vmem>>, %arg10: memref<128x1xf32, #tpu.memory_space<vmem>>, %arg11: memref<1xf32, #tpu.memory_space<smem>>, %arg12: memref<1x128xf32, #tpu.memory_space<vmem>>) attributes {dimension_semantics = [#tpu.dimension_semantics<parallel>], iteration_bounds = array<i64: 1>, scalar_prefetch = 0 : i64, scratch_operands = 0 : i64, tpu.core_type = #tpu.core_type<tc>, window_params = [{transform_indices = @transform_0, window_bounds = array<i64: 32, 128>}, {transform_indices = @transform_1, window_bounds = array<i64: 32, 128>}, {transform_indices = @transform_2, window_bounds = array<i64: 16, 128>}, {pipeline_mode = #tpu.pipeline_mode<synchronous>, transform_indices = @transform_3, window_bounds = array<i64: 128, 16>}, {pipeline_mode = #tpu.pipeline_mode<synchronous>, transform_indices = @transform_4, window_bounds = array<i64: 128, 1>}, {pipeline_mode = #tpu.pipeline_mode<synchronous>, transform_indices = @transform_5, window_bounds = array<i64: 128, 1>}, {transform_indices = @transform_6, window_bounds = array<i64: 1>}, {pipeline_mode = #tpu.pipeline_mode<synchronous>, transform_indices = @transform_7, window_bounds = array<i64: 128, 2>}, {pipeline_mode = #tpu.pipeline_mode<synchronous>, transform_indices = @transform_8, window_bounds = array<i64: 128, 1>}, {pipeline_mode = #tpu.pipeline_mode<synchronous>, transform_indices = @transform_9, window_bounds = array<i64: 128, 1>}, {transform_indices = @transform_10, window_bounds = array<i64: 1>}, {transform_indices = @transform_11, window_bounds = array<i64: 1, 128>}]} {
    %c0 = arith.constant 0 : index
    %c0_0 = arith.constant 0 : index
    %0 = vector.load %arg1[%c0, %c0_0] : memref<32x128xf32, #tpu.memory_space<vmem>>, vector<32x128xf32>
    %c0_1 = arith.constant 0 : index
    %c0_2 = arith.constant 0 : index
    %1 = vector.load %arg2[%c0_1, %c0_2] : memref<32x128xf32, #tpu.memory_space<vmem>>, vector<32x128xf32>
    %2 = arith.mulf %0, %1 : vector<32x128xf32>
    %cst = arith.constant dense<0.000000e+00> : vector<128xf32>
    %3 = vector.multi_reduction <add>, %2, %cst [0] : vector<32x128xf32> to vector<128xf32>
    %4 = vector.shape_cast %3 : vector<128xf32> to vector<1x128xf32>
    %c0_3 = arith.constant 0 : index
    %c0_4 = arith.constant 0 : index
    %5 = vector.load %arg4[%c0_3, %c0_4] : memref<128x16xf32, #tpu.memory_space<vmem>>, vector<128x16xf32>
    %c0_5 = arith.constant 0 : index
    %c0_6 = arith.constant 0 : index
    %6 = vector.load %arg3[%c0_5, %c0_6] : memref<16x128xf32, #tpu.memory_space<vmem>>, vector<16x128xf32>
    %cst_7 = arith.constant dense<0.000000e+00> : vector<128x128xf32>
    %7 = tpu.matmul %5, %6, %cst_7 {dimension_numbers = #tpu.dot_dimension_numbers<[1], [0], [0], [1], [0, 0, 1, 1], [], []>} : vector<128x16xf32>, vector<16x128xf32>, vector<128x128xf32> -> vector<128x128xf32>
    %c0_8 = arith.constant 0 : index
    %c0_9 = arith.constant 0 : index
    %8 = vector.load %arg5[%c0_8, %c0_9] : memref<128x1xf32, #tpu.memory_space<vmem>>, vector<128x1xf32>
    %9 = vector.broadcast %8 : vector<128x1xf32> to vector<128x128xf32>
    %10 = arith.addf %7, %9 : vector<128x128xf32>
    %cst_10 = arith.constant 0.000000e+00 : f32
    %11 = vector.broadcast %cst_10 : f32 to vector<128x128xf32>
    %12 = arith.maximumf %10, %11 : vector<128x128xf32>
    %c0_11 = arith.constant 0 : index
    %c0_12 = arith.constant 0 : index
    %13 = vector.load %arg6[%c0_11, %c0_12] : memref<128x1xf32, #tpu.memory_space<vmem>>, vector<128x1xf32>
    %14 = vector.broadcast %13 : vector<128x1xf32> to vector<128x128xf32>
    %15 = arith.mulf %12, %14 : vector<128x128xf32>
    %cst_13 = arith.constant dense<0.000000e+00> : vector<128xf32>
    %16 = vector.multi_reduction <add>, %15, %cst_13 [0] : vector<128x128xf32> to vector<128xf32>
    %17 = vector.shape_cast %16 : vector<128xf32> to vector<1x128xf32>
    %c0_14 = arith.constant 0 : index
    %18 = memref.load %arg7[%c0_14] : memref<1xf32, #tpu.memory_space<smem>>
    %19 = vector.broadcast %18 : f32 to vector<1x128xf32>
    %20 = arith.addf %17, %19 : vector<1x128xf32>
    %c0_15 = arith.constant 0 : index
    %c0_16 = arith.constant 0 : index
    %21 = vector.load %arg8[%c0_15, %c0_16] : memref<128x2xf32, #tpu.memory_space<vmem>>, vector<128x1xf32>
    %22 = vector.broadcast %21 : vector<128x1xf32> to vector<128x128xf32>
    %23 = vector.broadcast %4 : vector<1x128xf32> to vector<128x128xf32>
    %24 = arith.mulf %22, %23 : vector<128x128xf32>
    %c0_17 = arith.constant 0 : index
    %c1 = arith.constant 1 : index
    %25 = vector.load %arg8[%c0_17, %c1] : memref<128x2xf32, #tpu.memory_space<vmem>>, vector<128x1xf32>
    %26 = vector.broadcast %25 : vector<128x1xf32> to vector<128x128xf32>
    %27 = vector.broadcast %20 : vector<1x128xf32> to vector<128x128xf32>
    %28 = arith.mulf %26, %27 : vector<128x128xf32>
    %29 = arith.addf %24, %28 : vector<128x128xf32>
    %c0_18 = arith.constant 0 : index
    %c0_19 = arith.constant 0 : index
    %30 = vector.load %arg9[%c0_18, %c0_19] : memref<128x1xf32, #tpu.memory_space<vmem>>, vector<128x1xf32>
    %31 = vector.broadcast %30 : vector<128x1xf32> to vector<128x128xf32>
    %32 = arith.addf %29, %31 : vector<128x128xf32>
    %cst_20 = arith.constant 0.000000e+00 : f32
    %33 = vector.broadcast %cst_20 : f32 to vector<128x128xf32>
    %34 = arith.maximumf %32, %33 : vector<128x128xf32>
    %c0_21 = arith.constant 0 : index
    %c0_22 = arith.constant 0 : index
    %35 = vector.load %arg10[%c0_21, %c0_22] : memref<128x1xf32, #tpu.memory_space<vmem>>, vector<128x1xf32>
    %36 = vector.broadcast %35 : vector<128x1xf32> to vector<128x128xf32>
    %37 = arith.mulf %34, %36 : vector<128x128xf32>
    %cst_23 = arith.constant dense<0.000000e+00> : vector<128xf32>
    %38 = vector.multi_reduction <add>, %37, %cst_23 [0] : vector<128x128xf32> to vector<128xf32>
    %39 = vector.shape_cast %38 : vector<128xf32> to vector<1x128xf32>
    %c0_24 = arith.constant 0 : index
    %40 = memref.load %arg11[%c0_24] : memref<1xf32, #tpu.memory_space<smem>>
    %41 = vector.broadcast %40 : f32 to vector<1x128xf32>
    %42 = arith.addf %39, %41 : vector<1x128xf32>
    %c0_25 = arith.constant 0 : index
    %c0_26 = arith.constant 0 : index
    %43 = vector.load %arg12[%c0_25, %c0_26] : memref<1x128xf32, #tpu.memory_space<vmem>>, vector<1x128xf32>
    tpu.vector_store %arg12[%c0_25, %c0_26], %42 {strides = array<i32>} : memref<1x128xf32, #tpu.memory_space<vmem>>, vector<1x128xf32>,
    return
  }
  func.func @transform_0(%arg0: i32) -> (i32, i32) {
    %c0_i32 = arith.constant 0 : i32
    %c0_i32_0 = arith.constant 0 : i32
    return %c0_i32, %arg0 : i32, i32
  }
  func.func @transform_1(%arg0: i32) -> (i32, i32) {
    %c0_i32 = arith.constant 0 : i32
    %c0_i32_0 = arith.constant 0 : i32
    return %c0_i32, %arg0 : i32, i32
  }
  func.func @transform_2(%arg0: i32) -> (i32, i32) {
    %c0_i32 = arith.constant 0 : i32
    %c0_i32_0 = arith.constant 0 : i32
    return %c0_i32, %arg0 : i32, i32
  }
  func.func @transform_3(%arg0: i32) -> (i32, i32) {
    %c0_i32 = arith.constant 0 : i32
    %c0_i32_0 = arith.constant 0 : i32
    %c0_i32_1 = arith.constant 0 : i32
    return %c0_i32, %c0_i32_0 : i32, i32
  }
  func.func @transform_4(%arg0: i32) -> (i32, i32) {
    %c0_i32 = arith.constant 0 : i32
    %c0_i32_0 = arith.constant 0 : i32
    %c0_i32_1 = arith.constant 0 : i32
    return %c0_i32, %c0_i32_0 : i32, i32
  }
  func.func @transform_5(%arg0: i32) -> (i32, i32) {
    %c0_i32 = arith.constant 0 : i32
    %c0_i32_0 = arith.constant 0 : i32
    %c0_i32_1 = arith.constant 0 : i32
    return %c0_i32, %c0_i32_0 : i32, i32
  }
  func.func @transform_6(%arg0: i32) -> i32 {
    %c0_i32 = arith.constant 0 : i32
    %c0_i32_0 = arith.constant 0 : i32
    return %c0_i32 : i32
  }
  func.func @transform_7(%arg0: i32) -> (i32, i32) {
    %c0_i32 = arith.constant 0 : i32
    %c0_i32_0 = arith.constant 0 : i32
    %c0_i32_1 = arith.constant 0 : i32
    return %c0_i32, %c0_i32_0 : i32, i32
  }
  func.func @transform_8(%arg0: i32) -> (i32, i32) {
    %c0_i32 = arith.constant 0 : i32
    %c0_i32_0 = arith.constant 0 : i32
    %c0_i32_1 = arith.constant 0 : i32
    return %c0_i32, %c0_i32_0 : i32, i32
  }
  func.func @transform_9(%arg0: i32) -> (i32, i32) {
    %c0_i32 = arith.constant 0 : i32
    %c0_i32_0 = arith.constant 0 : i32
    %c0_i32_1 = arith.constant 0 : i32
    return %c0_i32, %c0_i32_0 : i32, i32
  }
  func.func @transform_10(%arg0: i32) -> i32 {
    %c0_i32 = arith.constant 0 : i32
    %c0_i32_0 = arith.constant 0 : i32
    return %c0_i32 : i32
  }
  func.func @transform_11(%arg0: i32) -> (i32, i32) {
    %c0_i32 = arith.constant 0 : i32
    %c0_i32_0 = arith.constant 0 : i32
    return %c0_i32, %arg0 : i32, i32
  }
}

</mosaic_0001>

<llo_original>
// kernel: hybrid_recommender_forward.1
$region0: #{hybrid_recommender_forward.1}
  #allocation0 [shape = 'u32[]', space=smem, size = 0x4, offset = 0x4, fixed_abs, tag = 'smem constant byte address 0x4 - core index']
  #allocation1 [shape = 'u32[144,128]{1,0:T(1,128)}', space=vmem, size = 0x12000, scoped, tag = 'internal scratch']
  #allocation2 [shape = 'f32[1]{0:T(128)S(6)}', space=smem, size = 0x200, scoped, tag = 'scoped memory for hybrid_recommender_forward.1']
  #allocation3 [shape = 'f32[1]{0:T(128)S(6)}', space=smem, size = 0x200, scoped, tag = 'scoped memory for hybrid_recommender_forward.1']
  %s0 = inlined_call_operand.vmem [shape: f32[32,128], index: 0, kind: input, shape index: {}]
  %s1 = inlined_call_operand.vmem [shape: f32[32,128], index: 1, kind: input, shape index: {}]
  %s2 = inlined_call_operand.vmem [shape: f32[16,128], index: 2, kind: input, shape index: {}]
  %s3 = inlined_call_operand.vmem [shape: f32[128,16], index: 3, kind: input, shape index: {}]
  %s4 = inlined_call_operand.vmem [shape: f32[128,1], index: 4, kind: input, shape index: {}]
  %s5 = inlined_call_operand.vmem [shape: f32[128,1], index: 5, kind: input, shape index: {}]
  %s6 = inlined_call_operand.<no memory space> [shape: f32[1], index: 6, kind: input, shape index: {}]
  %s7 = inlined_call_operand.vmem [shape: f32[128,2], index: 7, kind: input, shape index: {}]
  %s8 = inlined_call_operand.vmem [shape: f32[128,1], index: 8, kind: input, shape index: {}]
  %s9 = inlined_call_operand.vmem [shape: f32[128,1], index: 9, kind: input, shape index: {}]
  %s10 = inlined_call_operand.<no memory space> [shape: f32[1], index: 10, kind: input, shape index: {}]
  %s11 = inlined_call_operand.vmem [shape: f32[1,128], index: 11, kind: output, shape index: {}]
  %s12 = sld [smem:[#allocation0]]
  $region54: #{hybrid_recommender_forward.1} parent=0
    _
  %s14 = ssub.s32 1, %s12
  %s15 = scalar_select 0, %s14, %s12
  %16 = sst [smem:[#allocation2]] %s6
  %17 = sst [smem:[#allocation3]] %s10
  // Predicated region
  $region2: #{hybrid_recommender_forward.1} parent=0 // pred_check
    _
  $region3: #{hybrid_recommender_forward.1} parent=0 // pred_check_branch
    %19 = sbr.rel (0) target = $region5
  $region4: #{hybrid_recommender_forward.1} parent=0 // pred_region
    _
  $region5: #{hybrid_recommender_forward.1} parent=0 // pred_fallthru
    _
  // Predicated region
  $region6: #{hybrid_recommender_forward.1} parent=0 // pred_check
    _
  $region7: #{hybrid_recommender_forward.1} parent=0 // pred_check_branch
    %21 = sbr.rel (0) target = $region9
  $region8: #{hybrid_recommender_forward.1} parent=0 // pred_region
    _
  $region9: #{hybrid_recommender_forward.1} parent=0 // pred_fallthru
    _
  // Predicated region
  $region10: #{hybrid_recommender_forward.1} parent=0 // pred_check
    _
  $region11: #{hybrid_recommender_forward.1} parent=0 // pred_check_branch
    %23 = sbr.rel (0) target = $region13
  $region12: #{hybrid_recommender_forward.1} parent=0 // pred_region
    _
  $region13: #{hybrid_recommender_forward.1} parent=0 // pred_fallthru
    _
  // Predicated region
  $region14: #{hybrid_recommender_forward.1} parent=0 // pred_check
    _
  $region15: #{hybrid_recommender_forward.1} parent=0 // pred_check_branch
    %25 = sbr.rel (0) target = $region17
  $region16: #{hybrid_recommender_forward.1} parent=0 // pred_region
    _
  $region17: #{hybrid_recommender_forward.1} parent=0 // pred_fallthru
    _
  // Predicated region
  $region18: #{hybrid_recommender_forward.1} parent=0 // pred_check
    _
  $region19: #{hybrid_recommender_forward.1} parent=0 // pred_check_branch
    %27 = sbr.rel (0) target = $region21
  $region20: #{hybrid_recommender_forward.1} parent=0 // pred_region
    _
  $region21: #{hybrid_recommender_forward.1} parent=0 // pred_fallthru
    _
  // Predicated region
  $region22: #{hybrid_recommender_forward.1} parent=0 // pred_check
    _
  $region23: #{hybrid_recommender_forward.1} parent=0 // pred_check_branch
    %29 = sbr.rel (0) target = $region25
  $region24: #{hybrid_recommender_forward.1} parent=0 // pred_region
    _
  $region25: #{hybrid_recommender_forward.1} parent=0 // pred_fallthru
    _
  // Predicated region
  $region26: #{hybrid_recommender_forward.1} parent=0 // pred_check
    _
  $region27: #{hybrid_recommender_forward.1} parent=0 // pred_check_branch
    %31 = sbr.rel (0) target = $region29
  $region28: #{hybrid_recommender_forward.1} parent=0 // pred_region
    _
  $region29: #{hybrid_recommender_forward.1} parent=0 // pred_fallthru
    _
  // Predicated region
  $region30: #{hybrid_recommender_forward.1} parent=0 // pred_check
    _
  $region31: #{hybrid_recommender_forward.1} parent=0 // pred_check_branch
    %33 = sbr.rel (0) target = $region33
  $region32: #{hybrid_recommender_forward.1} parent=0 // pred_region
    _
  $region33: #{hybrid_recommender_forward.1} parent=0 // pred_fallthru
    _
  // Predicated region
  $region34: #{hybrid_recommender_forward.1} parent=0 // pred_check
    _
  $region35: #{hybrid_recommender_forward.1} parent=0 // pred_check_branch
    %35 = sbr.rel (0) target = $region37
  $region36: #{hybrid_recommender_forward.1} parent=0 // pred_region
    _
  $region37: #{hybrid_recommender_forward.1} parent=0 // pred_fallthru
    _
  // Predicated region
  $region38: #{hybrid_recommender_forward.1} parent=0 // pred_check
    _
  $region39: #{hybrid_recommender_forward.1} parent=0 // pred_check_branch
    %37 = sbr.rel (0) target = $region41
  $region40: #{hybrid_recommender_forward.1} parent=0 // pred_region
    _
  $region41: #{hybrid_recommender_forward.1} parent=0 // pred_fallthru
    _
  // Predicated region
  $region42: #{hybrid_recommender_forward.1} parent=0 // pred_check
    _
  $region43: #{hybrid_recommender_forward.1} parent=0 // pred_check_branch
    %39 = sbr.rel (0) target = $region45
  $region44: #{hybrid_recommender_forward.1} parent=0 // pred_region
    _
  $region45: #{hybrid_recommender_forward.1} parent=0 // pred_fallthru
    _
  %v40 = vld [vmem:[%s0] sm:$0xff]
  %v41 = vld [vmem:[%s0 + $0x8] sm:$0xff]
  %v42 = vld [vmem:[%s0 + $0x10] sm:$0xff]
  %v43 = vld [vmem:[%s0 + $0x18] sm:$0xff]
  %v44 = vld [vmem:[%s1] sm:$0xff]
  %v45 = vld [vmem:[%s1 + $0x8] sm:$0xff]
  %v46 = vld [vmem:[%s1 + $0x10] sm:$0xff]
  %v47 = vld [vmem:[%s1 + $0x18] sm:$0xff]
  %v48 = vmul.f32 %v40, %v44
  %v49 = vmul.f32 %v41, %v45
  %v50 = vmul.f32 %v42, %v46
  %v51 = vmul.f32 %v43, %v47
  %v52 = vadd.f32 %v48, %v49
  %v53 = vadd.f32 %v52, %v50
  %v54 = vadd.f32 %v53, %v51
  %v55 = vrot.slane %v54, 4
  %v56 = vadd.f32 %v54, %v55
  %v57 = vrot.slane %v56, 2
  %v58 = vadd.f32 %v56, %v57
  %v59 = vrot.slane %v58, 1
  %v60 = vadd.f32 %v58, %v59
  %v61 = vld [vmem:[%s3] sm:$0xff]
  %v62 = vld [vmem:[%s3 + $0x8] sm:$0xff]
  %v63 = vld [vmem:[%s3 + $0x10] sm:$0xff]
  %v64 = vld [vmem:[%s3 + $0x18] sm:$0xff]
  %v65 = vld [vmem:[%s3 + $0x20] sm:$0xff]
  %v66 = vld [vmem:[%s3 + $0x28] sm:$0xff]
  %v67 = vld [vmem:[%s3 + $0x30] sm:$0xff]
  %v68 = vld [vmem:[%s3 + $0x38] sm:$0xff]
  %v69 = vld [vmem:[%s3 + $0x40] sm:$0xff]
  %v70 = vld [vmem:[%s3 + $0x48] sm:$0xff]
  %v71 = vld [vmem:[%s3 + $0x50] sm:$0xff]
  %v72 = vld [vmem:[%s3 + $0x58] sm:$0xff]
  %v73 = vld [vmem:[%s3 + $0x60] sm:$0xff]
  %v74 = vld [vmem:[%s3 + $0x68] sm:$0xff]
  %v75 = vld [vmem:[%s3 + $0x70] sm:$0xff]
  %v76 = vld [vmem:[%s3 + $0x78] sm:$0xff]
  %v77 = vld [vmem:[%s2] sm:$0xff]
  %v78 = vld [vmem:[%s2 + $0x8] sm:$0xff]
  %v79 = vld [vmem:[%s4] sm:$0xff]
  %v80 = vld [vmem:[%s4 + $0x8] sm:$0xff]
  %v81 = vld [vmem:[%s4 + $0x10] sm:$0xff]
  %v82 = vld [vmem:[%s4 + $0x18] sm:$0xff]
  %v83 = vld [vmem:[%s4 + $0x20] sm:$0xff]
  %v84 = vld [vmem:[%s4 + $0x28] sm:$0xff]
  %v85 = vld [vmem:[%s4 + $0x30] sm:$0xff]
  %v86 = vld [vmem:[%s4 + $0x38] sm:$0xff]
  %v87 = vld [vmem:[%s4 + $0x40] sm:$0xff]
  %v88 = vld [vmem:[%s4 + $0x48] sm:$0xff]
  %v89 = vld [vmem:[%s4 + $0x50] sm:$0xff]
  %v90 = vld [vmem:[%s4 + $0x58] sm:$0xff]
  %v91 = vld [vmem:[%s4 + $0x60] sm:$0xff]
  %v92 = vld [vmem:[%s4 + $0x68] sm:$0xff]
  %v93 = vld [vmem:[%s4 + $0x70] sm:$0xff]
  %v94 = vld [vmem:[%s4 + $0x78] sm:$0xff]
  %96 = vset.pattern.permute.xlu0 0
  %97 = vperm.xlu0 %96, %v79
  %v98 = vpop.permute.xlu0 %97
  %101 = vset.pattern.permute.xlu0 0
  %102 = vperm.xlu0 %101, %v80
  %v103 = vpop.permute.xlu0 %102
  %106 = vset.pattern.permute.xlu0 0
  %107 = vperm.xlu0 %106, %v81
  %v108 = vpop.permute.xlu0 %107
  %111 = vset.pattern.permute.xlu0 0
  %112 = vperm.xlu0 %111, %v82
  %v113 = vpop.permute.xlu0 %112
  %116 = vset.pattern.permute.xlu0 0
  %117 = vperm.xlu0 %116, %v83
  %v118 = vpop.permute.xlu0 %117
  %121 = vset.pattern.permute.xlu0 0
  %122 = vperm.xlu0 %121, %v84
  %v123 = vpop.permute.xlu0 %122
  %126 = vset.pattern.permute.xlu0 0
  %127 = vperm.xlu0 %126, %v85
  %v128 = vpop.permute.xlu0 %127
  %131 = vset.pattern.permute.xlu0 0
  %132 = vperm.xlu0 %131, %v86
  %v133 = vpop.permute.xlu0 %132
  %136 = vset.pattern.permute.xlu0 0
  %137 = vperm.xlu0 %136, %v87
  %v138 = vpop.permute.xlu0 %137
  %141 = vset.pattern.permute.xlu0 0
  %142 = vperm.xlu0 %141, %v88
  %v143 = vpop.permute.xlu0 %142
  %146 = vset.pattern.permute.xlu0 0
  %147 = vperm.xlu0 %146, %v89
  %v148 = vpop.permute.xlu0 %147
  %151 = vset.pattern.permute.xlu0 0
  %152 = vperm.xlu0 %151, %v90
  %v153 = vpop.permute.xlu0 %152
  %156 = vset.pattern.permute.xlu0 0
  %157 = vperm.xlu0 %156, %v91
  %v158 = vpop.permute.xlu0 %157
  %161 = vset.pattern.permute.xlu0 0
  %162 = vperm.xlu0 %161, %v92
  %v163 = vpop.permute.xlu0 %162
  %166 = vset.pattern.permute.xlu0 0
  %167 = vperm.xlu0 %166, %v93
  %v168 = vpop.permute.xlu0 %167
  %171 = vset.pattern.permute.xlu0 0
  %172 = vperm.xlu0 %171, %v94
  %v173 = vpop.permute.xlu0 %172
  %vm175 = vcmask 130048
  %v177 = vsel %vm175, %v61, 0
  %v180 = vsel %vm175, %v62, 0
  %v183 = vsel %vm175, %v63, 0
  %v186 = vsel %vm175, %v64, 0
  %v189 = vsel %vm175, %v65, 0
  %v192 = vsel %vm175, %v66, 0
  %v195 = vsel %vm175, %v67, 0
  %v198 = vsel %vm175, %v68, 0
  %v201 = vsel %vm175, %v69, 0
  %v204 = vsel %vm175, %v70, 0
  %v207 = vsel %vm175, %v71, 0
  %v210 = vsel %vm175, %v72, 0
  %v213 = vsel %vm175, %v73, 0
  %v216 = vsel %vm175, %v74, 0
  %v219 = vsel %vm175, %v75, 0
  %v222 = vsel %vm175, %v76, 0
  %224 = vmatprep.subr.mxu0 0.0
  %225 = vmatpush1.msra.mxu0 0.0
  %226 = vmatprep.subr.mxu0 0.0
  %227 = vmatpush1.msra.mxu0 0.0
  %228 = vmatprep.subr.mxu0 0.0
  %229 = vmatpush1.msra.mxu0 0.0
  %230 = vmatprep.subr.mxu0 0.0
  %231 = vmatpush1.msra.mxu0 0.0
  %232 = vmatprep.subr.mxu0 0.0
  %233 = vmatpush1.msra.mxu0 0.0
  %234 = vmatprep.subr.mxu0 0.0
  %235 = vmatpush1.msra.mxu0 0.0
  %236 = vmatprep.subr.mxu0 0.0
  %237 = vmatpush1.msra.mxu0 0.0
  %238 = vmatprep.subr.mxu0 0.0
  %239 = vmatpush1.msra.mxu0 0.0
  %240 = vmatprep.subr.mxu0 0.0
  %241 = vmatpush1.msra.mxu0 0.0
  %242 = vmatprep.subr.mxu0 0.0
  %243 = vmatpush1.msra.mxu0 0.0
  %244 = vmatprep.subr.mxu0 0.0
  %245 = vmatpush1.msra.mxu0 0.0
  %246 = vmatprep.subr.mxu0 0.0
  %247 = vmatpush1.msra.mxu0 0.0
  %248 = vmatprep.subr.mxu0 0.0
  %249 = vmatpush1.msra.mxu0 0.0
  %250 = vmatprep.subr.mxu0 0.0
  %251 = vmatpush1.msra.mxu0 0.0
  %252 = vmatprep.subr.mxu0 0.0
  %253 = vmatpush1.msra.mxu0 %v78
  %254 = vmatprep.subr.mxu0 0.0
  %255 = vmatpush1.msra.mxu0 %v77
  %256 = vmatprep.subr.mxu0 0.0
  %257 = vmatpush2.msra.mxu0 0.0
  %258 = vmatprep.subr.mxu0 0.0
  %259 = vmatpush2.msra.mxu0 0.0
  %260 = vmatprep.subr.mxu0 0.0
  %261 = vmatpush2.msra.mxu0 0.0
  %262 = vmatprep.subr.mxu0 0.0
  %263 = vmatpush2.msra.mxu0 0.0
  %264 = vmatprep.subr.mxu0 0.0
  %265 = vmatpush2.msra.mxu0 0.0
  %266 = vmatprep.subr.mxu0 0.0
  %267 = vmatpush2.msra.mxu0 0.0
  %268 = vmatprep.subr.mxu0 0.0
  %269 = vmatpush2.msra.mxu0 0.0
  %270 = vmatprep.subr.mxu0 0.0
  %271 = vmatpush2.msra.mxu0 0.0
  %272 = vmatprep.subr.mxu0 0.0
  %273 = vmatpush2.msra.mxu0 0.0
  %274 = vmatprep.subr.mxu0 0.0
  %275 = vmatpush2.msra.mxu0 0.0
  %276 = vmatprep.subr.mxu0 0.0
  %277 = vmatpush2.msra.mxu0 0.0
  %278 = vmatprep.subr.mxu0 0.0
  %279 = vmatpush2.msra.mxu0 0.0
  %280 = vmatprep.subr.mxu0 0.0
  %281 = vmatpush2.msra.mxu0 0.0
  %282 = vmatprep.subr.mxu0 0.0
  %283 = vmatpush2.msra.mxu0 0.0
  %284 = vmatprep.subr.mxu0 0.0
  %285 = vmatpush2.msra.mxu0 0.0
  %286 = vmatprep.subr.mxu0 0.0
  %287 = vmatpush2.msra.mxu0 0.0
  %288 = vmatprep.mubr.f32.mxu0 0.0
  %289 = vmatmul.mubr.f32.gmra.mxu0 %v177
  %v290 = vpop.f32.mrf.mxu0
  %v291 = vadd.f32 %v98, %v290
  %v292 = vpop.f32.mrf.mxu0
  %293 = vmatprep.mubr.f32.mxu0 0.0
  %294 = vmatmul.mubr.f32.gmra.mxu0 %v180
  %v295 = vpop.f32.mrf.mxu0
  %v296 = vadd.f32 %v103, %v295
  %v297 = vpop.f32.mrf.mxu0
  %298 = vmatprep.mubr.f32.mxu0 0.0
  %299 = vmatmul.mubr.f32.gmra.mxu0 %v183
  %v300 = vpop.f32.mrf.mxu0
  %v301 = vadd.f32 %v108, %v300
  %v302 = vpop.f32.mrf.mxu0
  %303 = vmatprep.mubr.f32.mxu0 0.0
  %304 = vmatmul.mubr.f32.gmra.mxu0 %v186
  %v305 = vpop.f32.mrf.mxu0
  %v306 = vadd.f32 %v113, %v305
  %v307 = vpop.f32.mrf.mxu0
  %308 = vmatprep.mubr.f32.mxu0 0.0
  %309 = vmatmul.mubr.f32.gmra.mxu0 %v189
  %v310 = vpop.f32.mrf.mxu0
  %v311 = vadd.f32 %v118, %v310
  %v312 = vpop.f32.mrf.mxu0
  %313 = vmatprep.mubr.f32.mxu0 0.0
  %314 = vmatmul.mubr.f32.gmra.mxu0 %v192
  %v315 = vpop.f32.mrf.mxu0
  %v316 = vadd.f32 %v123, %v315
  %v317 = vpop.f32.mrf.mxu0
  %318 = vmatprep.mubr.f32.mxu0 0.0
  %319 = vmatmul.mubr.f32.gmra.mxu0 %v195
  %v320 = vpop.f32.mrf.mxu0
  %v321 = vadd.f32 %v128, %v320
  %v322 = vpop.f32.mrf.mxu0
  %323 = vmatprep.mubr.f32.mxu0 0.0
  %324 = vmatmul.mubr.f32.gmra.mxu0 %v198
  %v325 = vpop.f32.mrf.mxu0
  %v326 = vadd.f32 %v133, %v325
  %v327 = vpop.f32.mrf.mxu0
  %328 = vmatprep.mubr.f32.mxu0 0.0
  %329 = vmatmul.mubr.f32.gmra.mxu0 %v201
  %v330 = vpop.f32.mrf.mxu0
  %v331 = vadd.f32 %v138, %v330
  %v332 = vpop.f32.mrf.mxu0
  %333 = vmatprep.mubr.f32.mxu0 0.0
  %334 = vmatmul.mubr.f32.gmra.mxu0 %v204
  %v335 = vpop.f32.mrf.mxu0
  %v336 = vadd.f32 %v143, %v335
  %v337 = vpop.f32.mrf.mxu0
  %338 = vmatprep.mubr.f32.mxu0 0.0
  %339 = vmatmul.mubr.f32.gmra.mxu0 %v207
  %v340 = vpop.f32.mrf.mxu0
  %v341 = vadd.f32 %v148, %v340
  %v342 = vpop.f32.mrf.mxu0
  %343 = vmatprep.mubr.f32.mxu0 0.0
  %344 = vmatmul.mubr.f32.gmra.mxu0 %v210
  %v345 = vpop.f32.mrf.mxu0
  %v346 = vadd.f32 %v153, %v345
  %v347 = vpop.f32.mrf.mxu0
  %348 = vmatprep.mubr.f32.mxu0 0.0
  %349 = vmatmul.mubr.f32.gmra.mxu0 %v213
  %v350 = vpop.f32.mrf.mxu0
  %v351 = vadd.f32 %v158, %v350
  %v352 = vpop.f32.mrf.mxu0
  %353 = vmatprep.mubr.f32.mxu0 0.0
  %354 = vmatmul.mubr.f32.gmra.mxu0 %v216
  %v355 = vpop.f32.mrf.mxu0
  %v356 = vadd.f32 %v163, %v355
  %v357 = vpop.f32.mrf.mxu0
  %358 = vmatprep.mubr.f32.mxu0 0.0
  %359 = vmatmul.mubr.f32.gmra.mxu0 %v219
  %v360 = vpop.f32.mrf.mxu0
  %v361 = vadd.f32 %v168, %v360
  %v362 = vpop.f32.mrf.mxu0
  %363 = vmatprep.mubr.f32.mxu0 0.0
  %364 = vmatmul.mubr.f32.gmra.mxu0 %v222
  %v365 = vpop.f32.mrf.mxu0
  %v366 = vadd.f32 %v173, %v365
  %v367 = vpop.f32.mrf.mxu0
  %368 = vdwg.mxu0
  %v369 = vmax.f32 %v291, 0.0
  %v370 = vmax.f32 %v296, 0.0
  %v371 = vmax.f32 %v301, 0.0
  %v372 = vmax.f32 %v306, 0.0
  %v373 = vmax.f32 %v311, 0.0
  %v374 = vmax.f32 %v316, 0.0
  %v375 = vmax.f32 %v321, 0.0
  %v376 = vmax.f32 %v326, 0.0
  %v377 = vmax.f32 %v331, 0.0
  %v378 = vmax.f32 %v336, 0.0
  %v379 = vmax.f32 %v341, 0.0
  %v380 = vmax.f32 %v346, 0.0
  %v381 = vmax.f32 %v351, 0.0
  %v382 = vmax.f32 %v356, 0.0
  %v383 = vmax.f32 %v361, 0.0
  %v384 = vmax.f32 %v366, 0.0
  %v385 = vld [vmem:[%s5] sm:$0xff]
  %v386 = vld [vmem:[%s5 + $0x8] sm:$0xff]
  %v387 = vld [vmem:[%s5 + $0x10] sm:$0xff]
  %v388 = vld [vmem:[%s5 + $0x18] sm:$0xff]
  %v389 = vld [vmem:[%s5 + $0x20] sm:$0xff]
  %v390 = vld [vmem:[%s5 + $0x28] sm:$0xff]
  %v391 = vld [vmem:[%s5 + $0x30] sm:$0xff]
  %v392 = vld [vmem:[%s5 + $0x38] sm:$0xff]
  %v393 = vld [vmem:[%s5 + $0x40] sm:$0xff]
  %v394 = vld [vmem:[%s5 + $0x48] sm:$0xff]
  %v395 = vld [vmem:[%s5 + $0x50] sm:$0xff]
  %v396 = vld [vmem:[%s5 + $0x58] sm:$0xff]
  %v397 = vld [vmem:[%s5 + $0x60] sm:$0xff]
  %v398 = vld [vmem:[%s5 + $0x68] sm:$0xff]
  %v399 = vld [vmem:[%s5 + $0x70] sm:$0xff]
  %v400 = vld [vmem:[%s5 + $0x78] sm:$0xff]
  %402 = vset.pattern.permute.xlu0 0
  %403 = vperm.xlu0 %402, %v385
  %v404 = vpop.permute.xlu0 %403
  %407 = vset.pattern.permute.xlu0 0
  %408 = vperm.xlu0 %407, %v386
  %v409 = vpop.permute.xlu0 %408
  %412 = vset.pattern.permute.xlu0 0
  %413 = vperm.xlu0 %412, %v387
  %v414 = vpop.permute.xlu0 %413
  %417 = vset.pattern.permute.xlu0 0
  %418 = vperm.xlu0 %417, %v388
  %v419 = vpop.permute.xlu0 %418
  %422 = vset.pattern.permute.xlu0 0
  %423 = vperm.xlu0 %422, %v389
  %v424 = vpop.permute.xlu0 %423
  %427 = vset.pattern.permute.xlu0 0
  %428 = vperm.xlu0 %427, %v390
  %v429 = vpop.permute.xlu0 %428
  %432 = vset.pattern.permute.xlu0 0
  %433 = vperm.xlu0 %432, %v391
  %v434 = vpop.permute.xlu0 %433
  %437 = vset.pattern.permute.xlu0 0
  %438 = vperm.xlu0 %437, %v392
  %v439 = vpop.permute.xlu0 %438
  %442 = vset.pattern.permute.xlu0 0
  %443 = vperm.xlu0 %442, %v393
  %v444 = vpop.permute.xlu0 %443
  %447 = vset.pattern.permute.xlu0 0
  %448 = vperm.xlu0 %447, %v394
  %v449 = vpop.permute.xlu0 %448
  %452 = vset.pattern.permute.xlu0 0
  %453 = vperm.xlu0 %452, %v395
  %v454 = vpop.permute.xlu0 %453
  %457 = vset.pattern.permute.xlu0 0
  %458 = vperm.xlu0 %457, %v396
  %v459 = vpop.permute.xlu0 %458
  %462 = vset.pattern.permute.xlu0 0
  %463 = vperm.xlu0 %462, %v397
  %v464 = vpop.permute.xlu0 %463
  %467 = vset.pattern.permute.xlu0 0
  %468 = vperm.xlu0 %467, %v398
  %v469 = vpop.permute.xlu0 %468
  %472 = vset.pattern.permute.xlu0 0
  %473 = vperm.xlu0 %472, %v399
  %v474 = vpop.permute.xlu0 %473
  %477 = vset.pattern.permute.xlu0 0
  %478 = vperm.xlu0 %477, %v400
  %v479 = vpop.permute.xlu0 %478
  %v481 = vmul.f32 %v369, %v404
  %v482 = vmul.f32 %v370, %v409
  %v483 = vmul.f32 %v371, %v414
  %v484 = vmul.f32 %v372, %v419
  %v485 = vmul.f32 %v373, %v424
  %v486 = vmul.f32 %v374, %v429
  %v487 = vmul.f32 %v375, %v434
  %v488 = vmul.f32 %v376, %v439
  %v489 = vmul.f32 %v377, %v444
  %v490 = vmul.f32 %v378, %v449
  %v491 = vmul.f32 %v379, %v454
  %v492 = vmul.f32 %v380, %v459
  %v493 = vmul.f32 %v381, %v464
  %v494 = vmul.f32 %v382, %v469
  %v495 = vmul.f32 %v383, %v474
  %v496 = vmul.f32 %v384, %v479
  %v497 = vadd.f32 %v481, %v482
  %v498 = vadd.f32 %v497, %v483
  %v499 = vadd.f32 %v498, %v484
  %v500 = vadd.f32 %v499, %v485
  %v501 = vadd.f32 %v500, %v486
  %v502 = vadd.f32 %v501, %v487
  %v503 = vadd.f32 %v502, %v488
  %v504 = vadd.f32 %v503, %v489
  %v505 = vadd.f32 %v504, %v490
  %v506 = vadd.f32 %v505, %v491
  %v507 = vadd.f32 %v506, %v492
  %v508 = vadd.f32 %v507, %v493
  %v509 = vadd.f32 %v508, %v494
  %v510 = vadd.f32 %v509, %v495
  %v511 = vadd.f32 %v510, %v496
  %v512 = vrot.slane %v511, 4
  %v513 = vadd.f32 %v511, %v512
  %v514 = vrot.slane %v513, 2
  %v515 = vadd.f32 %v513, %v514
  %v516 = vrot.slane %v515, 1
  %v517 = vadd.f32 %v515, %v516
  %s518 = sld [smem:[#allocation2]]
  %v519 = vstv %s518
  %v520 = vadd.f32 %v517, %v519
  %v521 = vld [vmem:[%s7] sm:$0xff]
  %v522 = vld [vmem:[%s7 + $0x8] sm:$0xff]
  %v523 = vld [vmem:[%s7 + $0x10] sm:$0xff]
  %v524 = vld [vmem:[%s7 + $0x18] sm:$0xff]
  %v525 = vld [vmem:[%s7 + $0x20] sm:$0xff]
  %v526 = vld [vmem:[%s7 + $0x28] sm:$0xff]
  %v527 = vld [vmem:[%s7 + $0x30] sm:$0xff]
  %v528 = vld [vmem:[%s7 + $0x38] sm:$0xff]
  %v529 = vld [vmem:[%s7 + $0x40] sm:$0xff]
  %v530 = vld [vmem:[%s7 + $0x48] sm:$0xff]
  %v531 = vld [vmem:[%s7 + $0x50] sm:$0xff]
  %v532 = vld [vmem:[%s7 + $0x58] sm:$0xff]
  %v533 = vld [vmem:[%s7 + $0x60] sm:$0xff]
  %v534 = vld [vmem:[%s7 + $0x68] sm:$0xff]
  %v535 = vld [vmem:[%s7 + $0x70] sm:$0xff]
  %v536 = vld [vmem:[%s7 + $0x78] sm:$0xff]
  %538 = vset.pattern.permute.xlu0 0
  %539 = vperm.xlu0 %538, %v521
  %v540 = vpop.permute.xlu0 %539
  %543 = vset.pattern.permute.xlu0 0
  %544 = vperm.xlu0 %543, %v522
  %v545 = vpop.permute.xlu0 %544
  %548 = vset.pattern.permute.xlu0 0
  %549 = vperm.xlu0 %548, %v523
  %v550 = vpop.permute.xlu0 %549
  %553 = vset.pattern.permute.xlu0 0
  %554 = vperm.xlu0 %553, %v524
  %v555 = vpop.permute.xlu0 %554
  %558 = vset.pattern.permute.xlu0 0
  %559 = vperm.xlu0 %558, %v525
  %v560 = vpop.permute.xlu0 %559
  %563 = vset.pattern.permute.xlu0 0
  %564 = vperm.xlu0 %563, %v526
  %v565 = vpop.permute.xlu0 %564
  %568 = vset.pattern.permute.xlu0 0
  %569 = vperm.xlu0 %568, %v527
  %v570 = vpop.permute.xlu0 %569
  %573 = vset.pattern.permute.xlu0 0
  %574 = vperm.xlu0 %573, %v528
  %v575 = vpop.permute.xlu0 %574
  %578 = vset.pattern.permute.xlu0 0
  %579 = vperm.xlu0 %578, %v529
  %v580 = vpop.permute.xlu0 %579
  %583 = vset.pattern.permute.xlu0 0
  %584 = vperm.xlu0 %583, %v530
  %v585 = vpop.permute.xlu0 %584
  %588 = vset.pattern.permute.xlu0 0
  %589 = vperm.xlu0 %588, %v531
  %v590 = vpop.permute.xlu0 %589
  %593 = vset.pattern.permute.xlu0 0
  %594 = vperm.xlu0 %593, %v532
  %v595 = vpop.permute.xlu0 %594
  %598 = vset.pattern.permute.xlu0 0
  %599 = vperm.xlu0 %598, %v533
  %v600 = vpop.permute.xlu0 %599
  %603 = vset.pattern.permute.xlu0 0
  %604 = vperm.xlu0 %603, %v534
  %v605 = vpop.permute.xlu0 %604
  %608 = vset.pattern.permute.xlu0 0
  %609 = vperm.xlu0 %608, %v535
  %v610 = vpop.permute.xlu0 %609
  %613 = vset.pattern.permute.xlu0 0
  %614 = vperm.xlu0 %613, %v536
  %v615 = vpop.permute.xlu0 %614
  %v617 = vmul.f32 %v540, %v60
  %v618 = vmul.f32 %v545, %v60
  %v619 = vmul.f32 %v550, %v60
  %v620 = vmul.f32 %v555, %v60
  %v621 = vmul.f32 %v560, %v60
  %v622 = vmul.f32 %v565, %v60
  %v623 = vmul.f32 %v570, %v60
  %v624 = vmul.f32 %v575, %v60
  %v625 = vmul.f32 %v580, %v60
  %v626 = vmul.f32 %v585, %v60
  %v627 = vmul.f32 %v590, %v60
  %v628 = vmul.f32 %v595, %v60
  %v629 = vmul.f32 %v600, %v60
  %v630 = vmul.f32 %v605, %v60
  %v631 = vmul.f32 %v610, %v60
  %v632 = vmul.f32 %v615, %v60
  %633 = vset.pattern.permute.xlu0 1
  %634 = vperm.xlu0 %633, %v521
  %v635 = vpop.permute.xlu0 %634
  %637 = vset.pattern.permute.xlu0 1
  %638 = vperm.xlu0 %637, %v522
  %v639 = vpop.permute.xlu0 %638
  %641 = vset.pattern.permute.xlu0 1
  %642 = vperm.xlu0 %641, %v523
  %v643 = vpop.permute.xlu0 %642
  %645 = vset.pattern.permute.xlu0 1
  %646 = vperm.xlu0 %645, %v524
  %v647 = vpop.permute.xlu0 %646
  %649 = vset.pattern.permute.xlu0 1
  %650 = vperm.xlu0 %649, %v525
  %v651 = vpop.permute.xlu0 %650
  %653 = vset.pattern.permute.xlu0 1
  %654 = vperm.xlu0 %653, %v526
  %v655 = vpop.permute.xlu0 %654
  %657 = vset.pattern.permute.xlu0 1
  %658 = vperm.xlu0 %657, %v527
  %v659 = vpop.permute.xlu0 %658
  %661 = vset.pattern.permute.xlu0 1
  %662 = vperm.xlu0 %661, %v528
  %v663 = vpop.permute.xlu0 %662
  %665 = vset.pattern.permute.xlu0 1
  %666 = vperm.xlu0 %665, %v529
  %v667 = vpop.permute.xlu0 %666
  %669 = vset.pattern.permute.xlu0 1
  %670 = vperm.xlu0 %669, %v530
  %v671 = vpop.permute.xlu0 %670
  %673 = vset.pattern.permute.xlu0 1
  %674 = vperm.xlu0 %673, %v531
  %v675 = vpop.permute.xlu0 %674
  %677 = vset.pattern.permute.xlu0 1
  %678 = vperm.xlu0 %677, %v532
  %v679 = vpop.permute.xlu0 %678
  %681 = vset.pattern.permute.xlu0 1
  %682 = vperm.xlu0 %681, %v533
  %v683 = vpop.permute.xlu0 %682
  %685 = vset.pattern.permute.xlu0 1
  %686 = vperm.xlu0 %685, %v534
  %v687 = vpop.permute.xlu0 %686
  %689 = vset.pattern.permute.xlu0 1
  %690 = vperm.xlu0 %689, %v535
  %v691 = vpop.permute.xlu0 %690
  %693 = vset.pattern.permute.xlu0 1
  %694 = vperm.xlu0 %693, %v536
  %v695 = vpop.permute.xlu0 %694
  %v697 = vmul.f32 %v635, %v520
  %v698 = vmul.f32 %v639, %v520
  %v699 = vmul.f32 %v643, %v520
  %v700 = vmul.f32 %v647, %v520
  %v701 = vmul.f32 %v651, %v520
  %v702 = vmul.f32 %v655, %v520
  %v703 = vmul.f32 %v659, %v520
  %v704 = vmul.f32 %v663, %v520
  %v705 = vmul.f32 %v667, %v520
  %v706 = vmul.f32 %v671, %v520
  %v707 = vmul.f32 %v675, %v520
  %v708 = vmul.f32 %v679, %v520
  %v709 = vmul.f32 %v683, %v520
  %v710 = vmul.f32 %v687, %v520
  %v711 = vmul.f32 %v691, %v520
  %v712 = vmul.f32 %v695, %v520
  %v713 = vadd.f32 %v617, %v697
  %v714 = vadd.f32 %v618, %v698
  %v715 = vadd.f32 %v619, %v699
  %v716 = vadd.f32 %v620, %v700
  %v717 = vadd.f32 %v621, %v701
  %v718 = vadd.f32 %v622, %v702
  %v719 = vadd.f32 %v623, %v703
  %v720 = vadd.f32 %v624, %v704
  %v721 = vadd.f32 %v625, %v705
  %v722 = vadd.f32 %v626, %v706
  %v723 = vadd.f32 %v627, %v707
  %v724 = vadd.f32 %v628, %v708
  %v725 = vadd.f32 %v629, %v709
  %v726 = vadd.f32 %v630, %v710
  %v727 = vadd.f32 %v631, %v711
  %v728 = vadd.f32 %v632, %v712
  %v729 = vld [vmem:[%s8] sm:$0xff]
  %v730 = vld [vmem:[%s8 + $0x8] sm:$0xff]
  %v731 = vld [vmem:[%s8 + $0x10] sm:$0xff]
  %v732 = vld [vmem:[%s8 + $0x18] sm:$0xff]
  %v733 = vld [vmem:[%s8 + $0x20] sm:$0xff]
  %v734 = vld [vmem:[%s8 + $0x28] sm:$0xff]
  %v735 = vld [vmem:[%s8 + $0x30] sm:$0xff]
  %v736 = vld [vmem:[%s8 + $0x38] sm:$0xff]
  %v737 = vld [vmem:[%s8 + $0x40] sm:$0xff]
  %v738 = vld [vmem:[%s8 + $0x48] sm:$0xff]
  %v739 = vld [vmem:[%s8 + $0x50] sm:$0xff]
  %v740 = vld [vmem:[%s8 + $0x58] sm:$0xff]
  %v741 = vld [vmem:[%s8 + $0x60] sm:$0xff]
  %v742 = vld [vmem:[%s8 + $0x68] sm:$0xff]
  %v743 = vld [vmem:[%s8 + $0x70] sm:$0xff]
  %v744 = vld [vmem:[%s8 + $0x78] sm:$0xff]
  %746 = vset.pattern.permute.xlu0 0
  %747 = vperm.xlu0 %746, %v729
  %v748 = vpop.permute.xlu0 %747
  %751 = vset.pattern.permute.xlu0 0
  %752 = vperm.xlu0 %751, %v730
  %v753 = vpop.permute.xlu0 %752
  %756 = vset.pattern.permute.xlu0 0
  %757 = vperm.xlu0 %756, %v731
  %v758 = vpop.permute.xlu0 %757
  %761 = vset.pattern.permute.xlu0 0
  %762 = vperm.xlu0 %761, %v732
  %v763 = vpop.permute.xlu0 %762
  %766 = vset.pattern.permute.xlu0 0
  %767 = vperm.xlu0 %766, %v733
  %v768 = vpop.permute.xlu0 %767
  %771 = vset.pattern.permute.xlu0 0
  %772 = vperm.xlu0 %771, %v734
  %v773 = vpop.permute.xlu0 %772
  %776 = vset.pattern.permute.xlu0 0
  %777 = vperm.xlu0 %776, %v735
  %v778 = vpop.permute.xlu0 %777
  %781 = vset.pattern.permute.xlu0 0
  %782 = vperm.xlu0 %781, %v736
  %v783 = vpop.permute.xlu0 %782
  %786 = vset.pattern.permute.xlu0 0
  %787 = vperm.xlu0 %786, %v737
  %v788 = vpop.permute.xlu0 %787
  %791 = vset.pattern.permute.xlu0 0
  %792 = vperm.xlu0 %791, %v738
  %v793 = vpop.permute.xlu0 %792
  %796 = vset.pattern.permute.xlu0 0
  %797 = vperm.xlu0 %796, %v739
  %v798 = vpop.permute.xlu0 %797
  %801 = vset.pattern.permute.xlu0 0
  %802 = vperm.xlu0 %801, %v740
  %v803 = vpop.permute.xlu0 %802
  %806 = vset.pattern.permute.xlu0 0
  %807 = vperm.xlu0 %806, %v741
  %v808 = vpop.permute.xlu0 %807
  %811 = vset.pattern.permute.xlu0 0
  %812 = vperm.xlu0 %811, %v742
  %v813 = vpop.permute.xlu0 %812
  %816 = vset.pattern.permute.xlu0 0
  %817 = vperm.xlu0 %816, %v743
  %v818 = vpop.permute.xlu0 %817
  %821 = vset.pattern.permute.xlu0 0
  %822 = vperm.xlu0 %821, %v744
  %v823 = vpop.permute.xlu0 %822
  %v825 = vadd.f32 %v713, %v748
  %v826 = vadd.f32 %v714, %v753
  %v827 = vadd.f32 %v715, %v758
  %v828 = vadd.f32 %v716, %v763
  %v829 = vadd.f32 %v717, %v768
  %v830 = vadd.f32 %v718, %v773
  %v831 = vadd.f32 %v719, %v778
  %v832 = vadd.f32 %v720, %v783
  %v833 = vadd.f32 %v721, %v788
  %v834 = vadd.f32 %v722, %v793
  %v835 = vadd.f32 %v723, %v798
  %v836 = vadd.f32 %v724, %v803
  %v837 = vadd.f32 %v725, %v808
  %v838 = vadd.f32 %v726, %v813
  %v839 = vadd.f32 %v727, %v818
  %v840 = vadd.f32 %v728, %v823
  %v841 = vmax.f32 %v825, 0.0
  %v842 = vmax.f32 %v826, 0.0
  %v843 = vmax.f32 %v827, 0.0
  %v844 = vmax.f32 %v828, 0.0
  %v845 = vmax.f32 %v829, 0.0
  %v846 = vmax.f32 %v830, 0.0
  %v847 = vmax.f32 %v831, 0.0
  %v848 = vmax.f32 %v832, 0.0
  %v849 = vmax.f32 %v833, 0.0
  %v850 = vmax.f32 %v834, 0.0
  %v851 = vmax.f32 %v835, 0.0
  %v852 = vmax.f32 %v836, 0.0
  %v853 = vmax.f32 %v837, 0.0
  %v854 = vmax.f32 %v838, 0.0
  %v855 = vmax.f32 %v839, 0.0
  %v856 = vmax.f32 %v840, 0.0
  %v857 = vld [vmem:[%s9] sm:$0xff]
  %v858 = vld [vmem:[%s9 + $0x8] sm:$0xff]
  %v859 = vld [vmem:[%s9 + $0x10] sm:$0xff]
  %v860 = vld [vmem:[%s9 + $0x18] sm:$0xff]
  %v861 = vld [vmem:[%s9 + $0x20] sm:$0xff]
  %v862 = vld [vmem:[%s9 + $0x28] sm:$0xff]
  %v863 = vld [vmem:[%s9 + $0x30] sm:$0xff]
  %v864 = vld [vmem:[%s9 + $0x38] sm:$0xff]
  %v865 = vld [vmem:[%s9 + $0x40] sm:$0xff]
  %v866 = vld [vmem:[%s9 + $0x48] sm:$0xff]
  %v867 = vld [vmem:[%s9 + $0x50] sm:$0xff]
  %v868 = vld [vmem:[%s9 + $0x58] sm:$0xff]
  %v869 = vld [vmem:[%s9 + $0x60] sm:$0xff]
  %v870 = vld [vmem:[%s9 + $0x68] sm:$0xff]
  %v871 = vld [vmem:[%s9 + $0x70] sm:$0xff]
  %v872 = vld [vmem:[%s9 + $0x78] sm:$0xff]
  %874 = vset.pattern.permute.xlu0 0
  %875 = vperm.xlu0 %874, %v857
  %v876 = vpop.permute.xlu0 %875
  %879 = vset.pattern.permute.xlu0 0
  %880 = vperm.xlu0 %879, %v858
  %v881 = vpop.permute.xlu0 %880
  %884 = vset.pattern.permute.xlu0 0
  %885 = vperm.xlu0 %884, %v859
  %v886 = vpop.permute.xlu0 %885
  %889 = vset.pattern.permute.xlu0 0
  %890 = vperm.xlu0 %889, %v860
  %v891 = vpop.permute.xlu0 %890
  %894 = vset.pattern.permute.xlu0 0
  %895 = vperm.xlu0 %894, %v861
  %v896 = vpop.permute.xlu0 %895
  %899 = vset.pattern.permute.xlu0 0
  %900 = vperm.xlu0 %899, %v862
  %v901 = vpop.permute.xlu0 %900
  %904 = vset.pattern.permute.xlu0 0
  %905 = vperm.xlu0 %904, %v863
  %v906 = vpop.permute.xlu0 %905
  %909 = vset.pattern.permute.xlu0 0
  %910 = vperm.xlu0 %909, %v864
  %v911 = vpop.permute.xlu0 %910
  %914 = vset.pattern.permute.xlu0 0
  %915 = vperm.xlu0 %914, %v865
  %v916 = vpop.permute.xlu0 %915
  %919 = vset.pattern.permute.xlu0 0
  %920 = vperm.xlu0 %919, %v866
  %v921 = vpop.permute.xlu0 %920
  %924 = vset.pattern.permute.xlu0 0
  %925 = vperm.xlu0 %924, %v867
  %v926 = vpop.permute.xlu0 %925
  %929 = vset.pattern.permute.xlu0 0
  %930 = vperm.xlu0 %929, %v868
  %v931 = vpop.permute.xlu0 %930
  %934 = vset.pattern.permute.xlu0 0
  %935 = vperm.xlu0 %934, %v869
  %v936 = vpop.permute.xlu0 %935
  %939 = vset.pattern.permute.xlu0 0
  %940 = vperm.xlu0 %939, %v870
  %v941 = vpop.permute.xlu0 %940
  %944 = vset.pattern.permute.xlu0 0
  %945 = vperm.xlu0 %944, %v871
  %v946 = vpop.permute.xlu0 %945
  %949 = vset.pattern.permute.xlu0 0
  %950 = vperm.xlu0 %949, %v872
  %v951 = vpop.permute.xlu0 %950
  %v953 = vmul.f32 %v841, %v876
  %v954 = vmul.f32 %v842, %v881
  %v955 = vmul.f32 %v843, %v886
  %v956 = vmul.f32 %v844, %v891
  %v957 = vmul.f32 %v845, %v896
  %v958 = vmul.f32 %v846, %v901
  %v959 = vmul.f32 %v847, %v906
  %v960 = vmul.f32 %v848, %v911
  %v961 = vmul.f32 %v849, %v916
  %v962 = vmul.f32 %v850, %v921
  %v963 = vmul.f32 %v851, %v926
  %v964 = vmul.f32 %v852, %v931
  %v965 = vmul.f32 %v853, %v936
  %v966 = vmul.f32 %v854, %v941
  %v967 = vmul.f32 %v855, %v946
  %v968 = vmul.f32 %v856, %v951
  %v969 = vadd.f32 %v953, %v954
  %v970 = vadd.f32 %v969, %v955
  %v971 = vadd.f32 %v970, %v956
  %v972 = vadd.f32 %v971, %v957
  %v973 = vadd.f32 %v972, %v958
  %v974 = vadd.f32 %v973, %v959
  %v975 = vadd.f32 %v974, %v960
  %v976 = vadd.f32 %v975, %v961
  %v977 = vadd.f32 %v976, %v962
  %v978 = vadd.f32 %v977, %v963
  %v979 = vadd.f32 %v978, %v964
  %v980 = vadd.f32 %v979, %v965
  %v981 = vadd.f32 %v980, %v966
  %v982 = vadd.f32 %v981, %v967
  %v983 = vadd.f32 %v982, %v968
  %v984 = vrot.slane %v983, 4
  %v985 = vadd.f32 %v983, %v984
  %v986 = vrot.slane %v985, 2
  %v987 = vadd.f32 %v985, %v986
  %v988 = vrot.slane %v987, 1
  %v989 = vadd.f32 %v987, %v988
  %s990 = sld [smem:[#allocation3]]
  %v991 = vstv %s990
  %v992 = vadd.f32 %v989, %v991
  %993 = vst [vmem:[%s11] sm:$0x1] %v992
  // Predicated region
  $region46: #{hybrid_recommender_forward.1} parent=0 // pred_check
    _
  $region47: #{hybrid_recommender_forward.1} parent=0 // pred_check_branch
    %995 = sbr.rel (0) target = $region49
  $region48: #{hybrid_recommender_forward.1} parent=0 // pred_region
    _
  $region49: #{hybrid_recommender_forward.1} parent=0 // pred_fallthru
    _
  // Predicated region
  $region50: #{hybrid_recommender_forward.1} parent=0 // pred_check
    _
  $region51: #{hybrid_recommender_forward.1} parent=0 // pred_check_branch
    %997 = sbr.rel (0) target = $region53
  $region52: #{hybrid_recommender_forward.1} parent=0 // pred_region
    _
  $region53: #{hybrid_recommender_forward.1} parent=0 // pred_fallthru
    _

</llo_original>
